<compile_context>
chip_gen: v5e
topology: v5e:2x2
jax: 0.10.0
libtpu: 0.0.40
codegen_flags: <defaults>
</compile_context>

<pallas_src>
import jax
import jax.numpy as jnp
from jax.experimental import pallas as pl
from jax.experimental.pallas import tpu as pltpu

NUM_FEATS = 6        # visual, acoustic, textual, metadata, social, temporal
FEATURE_DIM = 32     # TAFF.feature_dim
TIME_DIM = 15        # 2 + 2 + 11 concatenated time embeddings
TIME_DIM_AUG = 16    # +1 ones column that carries b_z through the v_z matmul


def taff_kernel(tpf_ref, f0_ref, f1_ref, f2_ref, f3_ref, f4_ref, f5_ref,
                wz_ref, vz_ref, qz_ref, out_ref):
    # tpf_ref : (tb, 16)  bf16  concatenated time embeddings + ones column
    # f*_ref  : (tb, 32)  bf16  one feature stream each (row tile)
    # wz_ref  : (32, H)   f32   w_z weight, pre-transposed (resident)
    # vz_ref  : (16, H)   f32   v_z weight^T with b_z appended as row 16 (resident)
    # qz_ref  : (1, H)    f32   q_z weight row (resident)
    # out_ref : (tb, 32)  f32   fused features (row tile)
    feat_refs = (f0_ref, f1_ref, f2_ref, f3_ref, f4_ref, f5_ref)

    wz = wz_ref[...]
    q = qz_ref[...]                                                           # (1, H)

    # shared attention term v_z(t_p) + b_z (bias folded into vz row 16)
    shared = jnp.dot(tpf_ref[...].astype(jnp.float32), vz_ref[...],
                     preferred_element_type=jnp.float32)                      # (tb, H)

    # upcast feature streams once; reused by the matmul and the weighted sum
    xs = [r[...].astype(jnp.float32) for r in feat_refs]                      # 6 x (tb, 32)

    # per-stream attention logits: small MXU matmul, bf16 tanh (EUP relief on
    # v6e/v7x; Mosaic inserts f32 converts on v5e), f32 lane reduction
    logits = []
    for x in xs:
        h = jnp.dot(x, wz, preferred_element_type=jnp.float32)                # (tb, H)
        t = jnp.tanh((h + shared).astype(jnp.bfloat16))                       # (tb, H) bf16
        logits.append(jnp.sum(t.astype(jnp.float32) * q,
                              axis=-1, keepdims=True))                        # (tb, 1)

    # 6-way softmax kept as six separate (tb, 1) columns (no (tb, 6) packing,
    # no lane slices) -- pure full-tile VPU maximum/add chains
    m = logits[0]
    for s in logits[1:]:
        m = jnp.maximum(m, s)
    exps = [jnp.exp(s - m) for s in logits]                                   # 6 x (tb, 1)
    denom = exps[0]
    for e in exps[1:]:
        denom = denom + e
    inv = pl.reciprocal(denom, approx=True)                                   # EUP, ~1e-4 rel

    # fused features = sum_f softmax_f * feature_f
    fused = (exps[0] * inv) * xs[0]
    for f in range(1, NUM_FEATS):
        fused = fused + (exps[f] * inv) * xs[f]
    out_ref[...] = fused


def _round_up(x, m):
    return -(-x // m) * m


def _pick_tile(batch, block_rows):
    """Row-tile size: multiple of 8 (or the full batch), large enough to
    amortize per-step overhead, small enough that the 'parallel' batch axis
    still splits across both v7x TensorCores with >=2 steps per core."""
    if batch <= block_rows:
        tb = batch
        if batch >= 2048:                      # split even a "fits in one tile" batch
            tb = _round_up(pl.cdiv(batch, 2), 8)
    else:
        tb = block_rows
    # prefer >= 8 grid steps when that still leaves >= 2048-row tiles
    eighth = _round_up(pl.cdiv(batch, 8), 8)
    if eighth >= 2048:
        tb = min(tb, eighth)
    return tb


def taff_forward(feature_list, t_p, params, *, block_rows=4096,
                 io_dtype=jnp.bfloat16):
    """feature_list: 6 arrays of shape (B, 32); t_p: (B, 3) int32."""
    assert block_rows % 8 == 0
    emb0, emb1, emb2, wz_t, vz_t, qz_row, bz = params
    H = wz_t.shape[1]

    # glue: tiny embedding gathers + b_z fold stay in plain JAX
    tpf = jnp.concatenate(
        [emb0[t_p[:, 0]], emb1[t_p[:, 1]], emb2[t_p[:, 2]]], axis=-1
    ).astype(jnp.float32)                                                     # (B, 15)
    B = tpf.shape[0]
    tpf_aug = jnp.concatenate(
        [tpf, jnp.ones((B, 1), jnp.float32)], axis=-1).astype(io_dtype)       # (B, 16)
    vz_aug = jnp.concatenate(
        [vz_t, bz.reshape(1, H)], axis=0).astype(jnp.float32)                 # (16, H)

    feats = [f.astype(io_dtype) for f in feature_list]                        # 6 x (B, 32) bf16

    tb = _pick_tile(B, block_rows)
    grid = (pl.cdiv(B, tb),)

    def row_spec(cols):
        return pl.BlockSpec((tb, cols), lambda i: (i, 0))

    def resident_spec(shape):
        return pl.BlockSpec(shape, lambda i: (0, 0))

    in_specs = (
        [row_spec(TIME_DIM_AUG)]
        + [row_spec(FEATURE_DIM)] * NUM_FEATS
        + [resident_spec((FEATURE_DIM, H)),    # w_z^T
           resident_spec((TIME_DIM_AUG, H)),   # v_z^T with b_z row
           resident_spec((1, H))]              # q_z row
    )

    return pl.pallas_call(
        taff_kernel,
        out_shape=jax.ShapeDtypeStruct((B, FEATURE_DIM), jnp.float32),
        grid=grid,
        in_specs=in_specs,
        out_specs=row_spec(FEATURE_DIM),
        compiler_params=pltpu.CompilerParams(
            dimension_semantics=("parallel",)),
    )(tpf_aug, *feats, wz_t.astype(jnp.float32), vz_aug,
      qz_row.astype(jnp.float32))


def taff_reference(feature_list, t_p, params, io_dtype=jnp.float32):
    """Pure-JAX reference mirroring PyTorch TAFF.forward (f32 math). io_dtype
    quantizes the streaming inputs the same way the kernel wrapper does."""
    emb0, emb1, emb2, wz_t, vz_t, qz_row, bz = params
    tpf = jnp.concatenate(
        [emb0[t_p[:, 0]], emb1[t_p[:, 1]], emb2[t_p[:, 2]]], axis=-1)
    tpf = tpf.astype(io_dtype).astype(jnp.float32)
    feats = [f.astype(io_dtype).astype(jnp.float32) for f in feature_list]
    shared = tpf @ vz_t + bz
    scores = []
    for f in feats:
        h = jnp.tanh(f @ wz_t + shared)
        scores.append(jnp.sum(h * qz_row, axis=-1, keepdims=True))            # (B, 1)
    scores = jnp.concatenate(scores, axis=1)                                  # (B, 6)
    w = jax.nn.softmax(scores, axis=1)                                        # (B, 6)
    stacked = jnp.stack(feats, axis=1)                                        # (B, 6, 32)
    return jnp.sum(stacked * w[..., None], axis=1)                            # (B, 32)


if __name__ == "__main__":
    H = 32  # attention_hidden_dim (equals feature_dim for TIML's PredictionLayer)

    key = jax.random.PRNGKey(0)
    pkeys = jax.random.split(key, 8)

    # deterministic parameter init (shapes follow the module __init__)
    emb0 = jax.random.normal(pkeys[0], (2, 2), jnp.float32)
    emb1 = jax.random.normal(pkeys[1], (2, 2), jnp.float32)
    emb2 = jax.random.normal(pkeys[2], (110, 11), jnp.float32)
    wz_t = jax.random.normal(pkeys[3], (FEATURE_DIM, H), jnp.float32) * 0.1   # w_z.weight.T
    vz_t = jax.random.normal(pkeys[4], (TIME_DIM, H), jnp.float32) * 0.1      # v_z.weight.T
    qz_row = jax.random.normal(pkeys[5], (1, H), jnp.float32) * 0.1           # q_z.weight (1, H)
    bz = jnp.zeros((H,), jnp.float32)                                         # b_z
    params = (emb0, emb1, emb2, wz_t, vz_t, qz_row, bz)

    # (batch, block_rows): tiny single-block case, exact multi-step grid, ragged last tile
    for B, block_rows in [(2, 4096), (192, 64), (200, 64)]:
        dkeys = jax.random.split(jax.random.fold_in(pkeys[6], B), NUM_FEATS + 3)
        feature_list = [
            jax.random.normal(dkeys[i], (B, FEATURE_DIM), jnp.float32)
            for i in range(NUM_FEATS)
        ]
        t_p = jnp.stack(
            [jax.random.randint(dkeys[NUM_FEATS + 0], (B,), 0, 2),
             jax.random.randint(dkeys[NUM_FEATS + 1], (B,), 0, 2),
             jax.random.randint(dkeys[NUM_FEATS + 2], (B,), 0, 110)],
            axis=1).astype(jnp.int32)

        out = jax.block_until_ready(
            taff_forward(feature_list, t_p, params, block_rows=block_rows))
        assert out.shape == (B, FEATURE_DIM)

        # Tight check vs a reference fed the same bf16-quantized inputs (f32
        # math): residual is only the kernel's bf16 tanh argument, the approx
        # softmax reciprocal, and f32 accumulation order.
        ref_q = taff_reference(feature_list, t_p, params, io_dtype=jnp.bfloat16)
        assert jnp.allclose(out, ref_q, rtol=5e-3, atol=5e-3), \
            f"mismatch vs quantized-input reference at B={B}"

        # Loose check vs the pure-f32 PyTorch-semantics reference: additionally
        # covers the bf16 I/O quantization of the streaming inputs.
        ref = taff_reference(feature_list, t_p, params, io_dtype=jnp.float32)
        assert jnp.allclose(out, ref, rtol=2e-2, atol=2e-2), \
            f"mismatch vs f32 reference at B={B}"

    print("KERNEL_OK")
</pallas_src>

<mosaic_0001>
module attributes {stable_mosaic.version = 11 : i64} {
  func.func @taff_kernel(%arg0: i32, %arg1: memref<2x16xbf16, #tpu.memory_space<vmem>>, %arg2: memref<2x32xbf16, #tpu.memory_space<vmem>>, %arg3: memref<2x32xbf16, #tpu.memory_space<vmem>>, %arg4: memref<2x32xbf16, #tpu.memory_space<vmem>>, %arg5: memref<2x32xbf16, #tpu.memory_space<vmem>>, %arg6: memref<2x32xbf16, #tpu.memory_space<vmem>>, %arg7: memref<2x32xbf16, #tpu.memory_space<vmem>>, %arg8: memref<32x32xf32, #tpu.memory_space<vmem>>, %arg9: memref<16x32xf32, #tpu.memory_space<vmem>>, %arg10: memref<1x32xf32, #tpu.memory_space<vmem>>, %arg11: memref<2x32xf32, #tpu.memory_space<vmem>>) attributes {dimension_semantics = [#tpu.dimension_semantics<parallel>], iteration_bounds = array<i64: 1>, scalar_prefetch = 0 : i64, scratch_operands = 0 : i64, tpu.core_type = #tpu.core_type<tc>, window_params = [{transform_indices = @transform_0, window_bounds = array<i64: 2, 16>}, {transform_indices = @transform_1, window_bounds = array<i64: 2, 32>}, {transform_indices = @transform_2, window_bounds = array<i64: 2, 32>}, {transform_indices = @transform_3, window_bounds = array<i64: 2, 32>}, {transform_indices = @transform_4, window_bounds = array<i64: 2, 32>}, {transform_indices = @transform_5, window_bounds = array<i64: 2, 32>}, {transform_indices = @transform_6, window_bounds = array<i64: 2, 32>}, {pipeline_mode = #tpu.pipeline_mode<synchronous>, transform_indices = @transform_7, window_bounds = array<i64: 32, 32>}, {pipeline_mode = #tpu.pipeline_mode<synchronous>, transform_indices = @transform_8, window_bounds = array<i64: 16, 32>}, {pipeline_mode = #tpu.pipeline_mode<synchronous>, transform_indices = @transform_9, window_bounds = array<i64: 1, 32>}, {transform_indices = @transform_10, window_bounds = array<i64: 2, 32>}]} {
    %c0 = arith.constant 0 : index
    %c0_0 = arith.constant 0 : index
    %0 = vector.load %arg8[%c0, %c0_0] : memref<32x32xf32, #tpu.memory_space<vmem>>, vector<32x32xf32>
    %c0_1 = arith.constant 0 : index
    %c0_2 = arith.constant 0 : index
    %1 = vector.load %arg10[%c0_1, %c0_2] : memref<1x32xf32, #tpu.memory_space<vmem>>, vector<1x32xf32>
    %c0_3 = arith.constant 0 : index
    %c0_4 = arith.constant 0 : index
    %2 = vector.load %arg1[%c0_3, %c0_4] : memref<2x16xbf16, #tpu.memory_space<vmem>>, vector<2x16xbf16>
    %3 = arith.extf %2 : vector<2x16xbf16> to vector<2x16xf32>
    %c0_5 = arith.constant 0 : index
    %c0_6 = arith.constant 0 : index
    %4 = vector.load %arg9[%c0_5, %c0_6] : memref<16x32xf32, #tpu.memory_space<vmem>>, vector<16x32xf32>
    %cst = arith.constant dense<0.000000e+00> : vector<2x32xf32>
    %5 = tpu.matmul %3, %4, %cst {dimension_numbers = #tpu.dot_dimension_numbers<[1], [0], [0], [1], [0, 0, 1, 1], [], []>} : vector<2x16xf32>, vector<16x32xf32>, vector<2x32xf32> -> vector<2x32xf32>
    %c0_7 = arith.constant 0 : index
    %c0_8 = arith.constant 0 : index
    %6 = vector.load %arg2[%c0_7, %c0_8] : memref<2x32xbf16, #tpu.memory_space<vmem>>, vector<2x32xbf16>
    %7 = arith.extf %6 : vector<2x32xbf16> to vector<2x32xf32>
    %c0_9 = arith.constant 0 : index
    %c0_10 = arith.constant 0 : index
    %8 = vector.load %arg3[%c0_9, %c0_10] : memref<2x32xbf16, #tpu.memory_space<vmem>>, vector<2x32xbf16>
    %9 = arith.extf %8 : vector<2x32xbf16> to vector<2x32xf32>
    %c0_11 = arith.constant 0 : index
    %c0_12 = arith.constant 0 : index
    %10 = vector.load %arg4[%c0_11, %c0_12] : memref<2x32xbf16, #tpu.memory_space<vmem>>, vector<2x32xbf16>
    %11 = arith.extf %10 : vector<2x32xbf16> to vector<2x32xf32>
    %c0_13 = arith.constant 0 : index
    %c0_14 = arith.constant 0 : index
    %12 = vector.load %arg5[%c0_13, %c0_14] : memref<2x32xbf16, #tpu.memory_space<vmem>>, vector<2x32xbf16>
    %13 = arith.extf %12 : vector<2x32xbf16> to vector<2x32xf32>
    %c0_15 = arith.constant 0 : index
    %c0_16 = arith.constant 0 : index
    %14 = vector.load %arg6[%c0_15, %c0_16] : memref<2x32xbf16, #tpu.memory_space<vmem>>, vector<2x32xbf16>
    %15 = arith.extf %14 : vector<2x32xbf16> to vector<2x32xf32>
    %c0_17 = arith.constant 0 : index
    %c0_18 = arith.constant 0 : index
    %16 = vector.load %arg7[%c0_17, %c0_18] : memref<2x32xbf16, #tpu.memory_space<vmem>>, vector<2x32xbf16>
    %17 = arith.extf %16 : vector<2x32xbf16> to vector<2x32xf32>
    %cst_19 = arith.constant dense<0.000000e+00> : vector<2x32xf32>
    %18 = tpu.matmul %7, %0, %cst_19 {dimension_numbers = #tpu.dot_dimension_numbers<[1], [0], [0], [1], [0, 0, 1, 1], [], []>} : vector<2x32xf32>, vector<32x32xf32>, vector<2x32xf32> -> vector<2x32xf32>
    %19 = arith.addf %18, %5 : vector<2x32xf32>
    %20 = arith.truncf %19 : vector<2x32xf32> to vector<2x32xbf16>
    %21 = math.tanh %20 : vector<2x32xbf16>
    %22 = arith.extf %21 : vector<2x32xbf16> to vector<2x32xf32>
    %23 = vector.broadcast %1 : vector<1x32xf32> to vector<2x32xf32>
    %24 = arith.mulf %22, %23 : vector<2x32xf32>
    %cst_20 = arith.constant dense<0.000000e+00> : vector<2xf32>
    %25 = vector.multi_reduction <add>, %24, %cst_20 [1] : vector<2x32xf32> to vector<2xf32>
    %26 = vector.shape_cast %25 : vector<2xf32> to vector<2x1xf32>
    %cst_21 = arith.constant dense<0.000000e+00> : vector<2x32xf32>
    %27 = tpu.matmul %9, %0, %cst_21 {dimension_numbers = #tpu.dot_dimension_numbers<[1], [0], [0], [1], [0, 0, 1, 1], [], []>} : vector<2x32xf32>, vector<32x32xf32>, vector<2x32xf32> -> vector<2x32xf32>
    %28 = arith.addf %27, %5 : vector<2x32xf32>
    %29 = arith.truncf %28 : vector<2x32xf32> to vector<2x32xbf16>
    %30 = math.tanh %29 : vector<2x32xbf16>
    %31 = arith.extf %30 : vector<2x32xbf16> to vector<2x32xf32>
    %32 = vector.broadcast %1 : vector<1x32xf32> to vector<2x32xf32>
    %33 = arith.mulf %31, %32 : vector<2x32xf32>
    %cst_22 = arith.constant dense<0.000000e+00> : vector<2xf32>
    %34 = vector.multi_reduction <add>, %33, %cst_22 [1] : vector<2x32xf32> to vector<2xf32>
    %35 = vector.shape_cast %34 : vector<2xf32> to vector<2x1xf32>
    %cst_23 = arith.constant dense<0.000000e+00> : vector<2x32xf32>
    %36 = tpu.matmul %11, %0, %cst_23 {dimension_numbers = #tpu.dot_dimension_numbers<[1], [0], [0], [1], [0, 0, 1, 1], [], []>} : vector<2x32xf32>, vector<32x32xf32>, vector<2x32xf32> -> vector<2x32xf32>
    %37 = arith.addf %36, %5 : vector<2x32xf32>
    %38 = arith.truncf %37 : vector<2x32xf32> to vector<2x32xbf16>
    %39 = math.tanh %38 : vector<2x32xbf16>
    %40 = arith.extf %39 : vector<2x32xbf16> to vector<2x32xf32>
    %41 = vector.broadcast %1 : vector<1x32xf32> to vector<2x32xf32>
    %42 = arith.mulf %40, %41 : vector<2x32xf32>
    %cst_24 = arith.constant dense<0.000000e+00> : vector<2xf32>
    %43 = vector.multi_reduction <add>, %42, %cst_24 [1] : vector<2x32xf32> to vector<2xf32>
    %44 = vector.shape_cast %43 : vector<2xf32> to vector<2x1xf32>
    %cst_25 = arith.constant dense<0.000000e+00> : vector<2x32xf32>
    %45 = tpu.matmul %13, %0, %cst_25 {dimension_numbers = #tpu.dot_dimension_numbers<[1], [0], [0], [1], [0, 0, 1, 1], [], []>} : vector<2x32xf32>, vector<32x32xf32>, vector<2x32xf32> -> vector<2x32xf32>
    %46 = arith.addf %45, %5 : vector<2x32xf32>
    %47 = arith.truncf %46 : vector<2x32xf32> to vector<2x32xbf16>
    %48 = math.tanh %47 : vector<2x32xbf16>
    %49 = arith.extf %48 : vector<2x32xbf16> to vector<2x32xf32>
    %50 = vector.broadcast %1 : vector<1x32xf32> to vector<2x32xf32>
    %51 = arith.mulf %49, %50 : vector<2x32xf32>
    %cst_26 = arith.constant dense<0.000000e+00> : vector<2xf32>
    %52 = vector.multi_reduction <add>, %51, %cst_26 [1] : vector<2x32xf32> to vector<2xf32>
    %53 = vector.shape_cast %52 : vector<2xf32> to vector<2x1xf32>
    %cst_27 = arith.constant dense<0.000000e+00> : vector<2x32xf32>
    %54 = tpu.matmul %15, %0, %cst_27 {dimension_numbers = #tpu.dot_dimension_numbers<[1], [0], [0], [1], [0, 0, 1, 1], [], []>} : vector<2x32xf32>, vector<32x32xf32>, vector<2x32xf32> -> vector<2x32xf32>
    %55 = arith.addf %54, %5 : vector<2x32xf32>
    %56 = arith.truncf %55 : vector<2x32xf32> to vector<2x32xbf16>
    %57 = math.tanh %56 : vector<2x32xbf16>
    %58 = arith.extf %57 : vector<2x32xbf16> to vector<2x32xf32>
    %59 = vector.broadcast %1 : vector<1x32xf32> to vector<2x32xf32>
    %60 = arith.mulf %58, %59 : vector<2x32xf32>
    %cst_28 = arith.constant dense<0.000000e+00> : vector<2xf32>
    %61 = vector.multi_reduction <add>, %60, %cst_28 [1] : vector<2x32xf32> to vector<2xf32>
    %62 = vector.shape_cast %61 : vector<2xf32> to vector<2x1xf32>
    %cst_29 = arith.constant dense<0.000000e+00> : vector<2x32xf32>
    %63 = tpu.matmul %17, %0, %cst_29 {dimension_numbers = #tpu.dot_dimension_numbers<[1], [0], [0], [1], [0, 0, 1, 1], [], []>} : vector<2x32xf32>, vector<32x32xf32>, vector<2x32xf32> -> vector<2x32xf32>
    %64 = arith.addf %63, %5 : vector<2x32xf32>
    %65 = arith.truncf %64 : vector<2x32xf32> to vector<2x32xbf16>
    %66 = math.tanh %65 : vector<2x32xbf16>
    %67 = arith.extf %66 : vector<2x32xbf16> to vector<2x32xf32>
    %68 = vector.broadcast %1 : vector<1x32xf32> to vector<2x32xf32>
    %69 = arith.mulf %67, %68 : vector<2x32xf32>
    %cst_30 = arith.constant dense<0.000000e+00> : vector<2xf32>
    %70 = vector.multi_reduction <add>, %69, %cst_30 [1] : vector<2x32xf32> to vector<2xf32>
    %71 = vector.shape_cast %70 : vector<2xf32> to vector<2x1xf32>
    %72 = arith.maximumf %26, %35 : vector<2x1xf32>
    %73 = arith.maximumf %72, %44 : vector<2x1xf32>
    %74 = arith.maximumf %73, %53 : vector<2x1xf32>
    %75 = arith.maximumf %74, %62 : vector<2x1xf32>
    %76 = arith.maximumf %75, %71 : vector<2x1xf32>
    %77 = arith.subf %26, %76 : vector<2x1xf32>
    %78 = math.exp %77 : vector<2x1xf32>
    %79 = arith.subf %35, %76 : vector<2x1xf32>
    %80 = math.exp %79 : vector<2x1xf32>
    %81 = arith.subf %44, %76 : vector<2x1xf32>
    %82 = math.exp %81 : vector<2x1xf32>
    %83 = arith.subf %53, %76 : vector<2x1xf32>
    %84 = math.exp %83 : vector<2x1xf32>
    %85 = arith.subf %62, %76 : vector<2x1xf32>
    %86 = math.exp %85 : vector<2x1xf32>
    %87 = arith.subf %71, %76 : vector<2x1xf32>
    %88 = math.exp %87 : vector<2x1xf32>
    %89 = arith.addf %78, %80 : vector<2x1xf32>
    %90 = arith.addf %89, %82 : vector<2x1xf32>
    %91 = arith.addf %90, %84 : vector<2x1xf32>
    %92 = arith.addf %91, %86 : vector<2x1xf32>
    %93 = arith.addf %92, %88 : vector<2x1xf32>
    %94 = tpu.reciprocal %93 {approx = true} : vector<2x1xf32> -> vector<2x1xf32>
    %95 = arith.mulf %78, %94 : vector<2x1xf32>
    %96 = vector.broadcast %95 : vector<2x1xf32> to vector<2x32xf32>
    %97 = arith.mulf %96, %7 : vector<2x32xf32>
    %98 = arith.mulf %80, %94 : vector<2x1xf32>
    %99 = vector.broadcast %98 : vector<2x1xf32> to vector<2x32xf32>
    %100 = arith.mulf %99, %9 : vector<2x32xf32>
    %101 = arith.addf %97, %100 : vector<2x32xf32>
    %102 = arith.mulf %82, %94 : vector<2x1xf32>
    %103 = vector.broadcast %102 : vector<2x1xf32> to vector<2x32xf32>
    %104 = arith.mulf %103, %11 : vector<2x32xf32>
    %105 = arith.addf %101, %104 : vector<2x32xf32>
    %106 = arith.mulf %84, %94 : vector<2x1xf32>
    %107 = vector.broadcast %106 : vector<2x1xf32> to vector<2x32xf32>
    %108 = arith.mulf %107, %13 : vector<2x32xf32>
    %109 = arith.addf %105, %108 : vector<2x32xf32>
    %110 = arith.mulf %86, %94 : vector<2x1xf32>
    %111 = vector.broadcast %110 : vector<2x1xf32> to vector<2x32xf32>
    %112 = arith.mulf %111, %15 : vector<2x32xf32>
    %113 = arith.addf %109, %112 : vector<2x32xf32>
    %114 = arith.mulf %88, %94 : vector<2x1xf32>
    %115 = vector.broadcast %114 : vector<2x1xf32> to vector<2x32xf32>
    %116 = arith.mulf %115, %17 : vector<2x32xf32>
    %117 = arith.addf %113, %116 : vector<2x32xf32>
    %c0_31 = arith.constant 0 : index
    %c0_32 = arith.constant 0 : index
    %118 = vector.load %arg11[%c0_31, %c0_32] : memref<2x32xf32, #tpu.memory_space<vmem>>, vector<2x32xf32>
    tpu.vector_store %arg11[%c0_31, %c0_32], %117 {strides = array<i32>} : memref<2x32xf32, #tpu.memory_space<vmem>>, vector<2x32xf32>,
    return
  }
  func.func @transform_0(%arg0: i32) -> (i32, i32) {
    %c0_i32 = arith.constant 0 : i32
    %c0_i32_0 = arith.constant 0 : i32
    return %arg0, %c0_i32 : i32, i32
  }
  func.func @transform_1(%arg0: i32) -> (i32, i32) {
    %c0_i32 = arith.constant 0 : i32
    %c0_i32_0 = arith.constant 0 : i32
    return %arg0, %c0_i32 : i32, i32
  }
  func.func @transform_2(%arg0: i32) -> (i32, i32) {
    %c0_i32 = arith.constant 0 : i32
    %c0_i32_0 = arith.constant 0 : i32
    return %arg0, %c0_i32 : i32, i32
  }
  func.func @transform_3(%arg0: i32) -> (i32, i32) {
    %c0_i32 = arith.constant 0 : i32
    %c0_i32_0 = arith.constant 0 : i32
    return %arg0, %c0_i32 : i32, i32
  }
  func.func @transform_4(%arg0: i32) -> (i32, i32) {
    %c0_i32 = arith.constant 0 : i32
    %c0_i32_0 = arith.constant 0 : i32
    return %arg0, %c0_i32 : i32, i32
  }
  func.func @transform_5(%arg0: i32) -> (i32, i32) {
    %c0_i32 = arith.constant 0 : i32
    %c0_i32_0 = arith.constant 0 : i32
    return %arg0, %c0_i32 : i32, i32
  }
  func.func @transform_6(%arg0: i32) -> (i32, i32) {
    %c0_i32 = arith.constant 0 : i32
    %c0_i32_0 = arith.constant 0 : i32
    return %arg0, %c0_i32 : i32, i32
  }
  func.func @transform_7(%arg0: i32) -> (i32, i32) {
    %c0_i32 = arith.constant 0 : i32
    %c0_i32_0 = arith.constant 0 : i32
    %c0_i32_1 = arith.constant 0 : i32
    return %c0_i32, %c0_i32_0 : i32, i32
  }
  func.func @transform_8(%arg0: i32) -> (i32, i32) {
    %c0_i32 = arith.constant 0 : i32
    %c0_i32_0 = arith.constant 0 : i32
    %c0_i32_1 = arith.constant 0 : i32
    return %c0_i32, %c0_i32_0 : i32, i32
  }
  func.func @transform_9(%arg0: i32) -> (i32, i32) {
    %c0_i32 = arith.constant 0 : i32
    %c0_i32_0 = arith.constant 0 : i32
    %c0_i32_1 = arith.constant 0 : i32
    return %c0_i32, %c0_i32_0 : i32, i32
  }
  func.func @transform_10(%arg0: i32) -> (i32, i32) {
    %c0_i32 = arith.constant 0 : i32
    %c0_i32_0 = arith.constant 0 : i32
    return %arg0, %c0_i32 : i32, i32
  }
}

</mosaic_0001>

<llo_original>
// kernel: tpu_custom_call.1
$region0: #{tpu_custom_call.1}
  #allocation0 [shape = 'u32[]', space=smem, size = 0x4, offset = 0x4, fixed_abs, tag = 'smem constant byte address 0x4 - core index']
  #allocation1 [shape = 'u32[72,128]{1,0:T(1,128)}', space=vmem, size = 0x9000, scoped, tag = 'internal scratch']
  %s0 = inlined_call_operand.hbm [shape: bf16[2,16], index: 0, kind: input, shape index: {}]
  %s1 = inlined_call_operand.hbm [shape: bf16[2,32], index: 1, kind: input, shape index: {}]
  %s2 = inlined_call_operand.vmem [shape: bf16[2,32], index: 2, kind: input, shape index: {}]
  %s3 = inlined_call_operand.vmem [shape: bf16[2,32], index: 3, kind: input, shape index: {}]
  %s4 = inlined_call_operand.vmem [shape: bf16[2,32], index: 4, kind: input, shape index: {}]
  %s5 = inlined_call_operand.vmem [shape: bf16[2,32], index: 5, kind: input, shape index: {}]
  %s6 = inlined_call_operand.vmem [shape: bf16[2,32], index: 6, kind: input, shape index: {}]
  %s7 = inlined_call_operand.hbm [shape: f32[32,32], index: 7, kind: input, shape index: {}]
  %s8 = inlined_call_operand.hbm [shape: f32[16,32], index: 8, kind: input, shape index: {}]
  %s9 = inlined_call_operand.vmem [shape: f32[1,32], index: 9, kind: input, shape index: {}]
  %s10 = inlined_call_operand.hbm [shape: f32[2,32], index: 10, kind: output, shape index: {}]
  %s11 = sld [smem:[#allocation0]]
  $region66: #{tpu_custom_call.1} parent=0
    _
  %s13 = ssub.s32 1, %s11
  %s14 = scalar_select 0, %s13, %s11
  $region1: #{tpu_custom_call.1} parent=0
    #allocation2 [shape = 'u8[512]{0}', space=vmem, size = 0x400, scoped, tag = 'input window, operand 0, single buffered']
    #allocation3 [shape = 's32[1]{0}', space=sflag, size = 0x4, scoped, tag = 'scoped memory for tpu_custom_call.1']
    #allocation4 [shape = 's32[1]{0}', space=sflag, size = 0x4, scoped, tag = 'scoped memory for tpu_custom_call.1']
    #allocation5 [shape = 'u8[512]{0}', space=vmem, size = 0x400, scoped, tag = 'input window, operand 1, single buffered']
    #allocation6 [shape = 's32[1]{0}', space=sflag, size = 0x4, scoped, tag = 'scoped memory for tpu_custom_call.1']
    #allocation7 [shape = 'u8[16384]{0}', space=vmem, size = 0x4000, scoped, tag = 'input window, operand 7, single buffered']
    #allocation8 [shape = 'u8[8192]{0}', space=vmem, size = 0x2000, scoped, tag = 'input window, operand 8, single buffered']
    #allocation9 [shape = 's32[1]{0}', space=sflag, size = 0x4, scoped, tag = 'scoped memory for tpu_custom_call.1']
    #allocation10 [shape = 'u8[1024]{0}', space=vmem, size = 0x400, scoped, tag = 'output window, operand 0, single buffered']
    %15 = vsyncpa [#allocation3], 0
    %16 = vsyncpa [#allocation6], 0
    %17 = vsyncpa [#allocation9], 0
    %18 = vsyncpa [#allocation4], 0
    // Predicated region
    $region2: #{tpu_custom_call.1} parent=1 // pred_check
      _
    $region3: #{tpu_custom_call.1} parent=1 // pred_check_branch
      %20 = sbr.rel (0) target = $region5
    $region4: #{tpu_custom_call.1} parent=1 // pred_region
      %22 = vsyncadd [#allocation3], 0
      %s24 = sshll.u32 %s0, 4
      %s25 = int_to_ptr.hbm [resolvable:$true] %s24
      %s26 = sshll.u32 [#allocation2], 4
      %s27 = int_to_ptr.vmem [resolvable:$true] %s26
      %29 = dma.hbm_to_vmem [thread:$0]  %s25, 16, %s27, [#allocation3]
    $region5: #{tpu_custom_call.1} parent=1 // pred_fallthru
      _
    // Predicated region
    $region6: #{tpu_custom_call.1} parent=1 // pred_check
      _
    $region7: #{tpu_custom_call.1} parent=1 // pred_check_branch
      %31 = sbr.rel (0) target = $region9
    $region8: #{tpu_custom_call.1} parent=1 // pred_region
      %33 = vsyncadd [#allocation6], 0
      %s35 = sshll.u32 %s1, 4
      %s36 = int_to_ptr.hbm [resolvable:$true] %s35
      %s37 = sshll.u32 [#allocation5], 4
      %s38 = int_to_ptr.vmem [resolvable:$true] %s37
      %40 = dma.hbm_to_vmem [thread:$0]  %s36, 16, %s38, [#allocation6]
    $region9: #{tpu_custom_call.1} parent=1 // pred_fallthru
      _
    // Predicated region
    $region10: #{tpu_custom_call.1} parent=1 // pred_check
      _
    $region11: #{tpu_custom_call.1} parent=1 // pred_check_branch
      %42 = sbr.rel (0) target = $region13
    $region12: #{tpu_custom_call.1} parent=1 // pred_region
      _
    $region13: #{tpu_custom_call.1} parent=1 // pred_fallthru
      _
    // Predicated region
    $region14: #{tpu_custom_call.1} parent=1 // pred_check
      _
    $region15: #{tpu_custom_call.1} parent=1 // pred_check_branch
      %44 = sbr.rel (0) target = $region17
    $region16: #{tpu_custom_call.1} parent=1 // pred_region
      _
    $region17: #{tpu_custom_call.1} parent=1 // pred_fallthru
      _
    // Predicated region
    $region18: #{tpu_custom_call.1} parent=1 // pred_check
      _
    $region19: #{tpu_custom_call.1} parent=1 // pred_check_branch
      %46 = sbr.rel (0) target = $region21
    $region20: #{tpu_custom_call.1} parent=1 // pred_region
      _
    $region21: #{tpu_custom_call.1} parent=1 // pred_fallthru
      _
    // Predicated region
    $region22: #{tpu_custom_call.1} parent=1 // pred_check
      _
    $region23: #{tpu_custom_call.1} parent=1 // pred_check_branch
      %48 = sbr.rel (0) target = $region25
    $region24: #{tpu_custom_call.1} parent=1 // pred_region
      _
    $region25: #{tpu_custom_call.1} parent=1 // pred_fallthru
      _
    // Predicated region
    $region26: #{tpu_custom_call.1} parent=1 // pred_check
      _
    $region27: #{tpu_custom_call.1} parent=1 // pred_check_branch
      %50 = sbr.rel (0) target = $region29
    $region28: #{tpu_custom_call.1} parent=1 // pred_region
      _
    $region29: #{tpu_custom_call.1} parent=1 // pred_fallthru
      _
    // Predicated region
    $region30: #{tpu_custom_call.1} parent=1 // pred_check
      _
    $region31: #{tpu_custom_call.1} parent=1 // pred_check_branch
      %52 = sbr.rel (0) target = $region33
    $region32: #{tpu_custom_call.1} parent=1 // pred_region
      %54 = vsyncadd [#allocation6], 0
      %s55 = sshll.u32 %s7, 4
      %s56 = int_to_ptr.hbm [resolvable:$true] %s55
      %s57 = sshll.u32 [#allocation7], 4
      %s58 = int_to_ptr.vmem [resolvable:$true] %s57
      %63 = dma.hbm_to_vmem [thread:$0]  %s56, 512, %s58, [#allocation6], 128, 128, 8
    $region33: #{tpu_custom_call.1} parent=1 // pred_fallthru
      _
    // Predicated region
    $region34: #{tpu_custom_call.1} parent=1 // pred_check
      _
    $region35: #{tpu_custom_call.1} parent=1 // pred_check_branch
      %65 = sbr.rel (0) target = $region37
    $region36: #{tpu_custom_call.1} parent=1 // pred_region
      %67 = vsyncadd [#allocation9], 0
      %s68 = sshll.u32 %s8, 4
      %s69 = int_to_ptr.hbm [resolvable:$true] %s68
      %s70 = sshll.u32 [#allocation8], 4
      %s71 = int_to_ptr.vmem [resolvable:$true] %s70
      %76 = dma.hbm_to_vmem [thread:$0]  %s69, 256, %s71, [#allocation9], 128, 128, 8
    $region37: #{tpu_custom_call.1} parent=1 // pred_fallthru
      _
    // Predicated region
    $region38: #{tpu_custom_call.1} parent=1 // pred_check
      _
    $region39: #{tpu_custom_call.1} parent=1 // pred_check_branch
      %78 = sbr.rel (0) target = $region41
    $region40: #{tpu_custom_call.1} parent=1 // pred_region
      _
    $region41: #{tpu_custom_call.1} parent=1 // pred_fallthru
      _
    // Predicated region
    $region42: #{tpu_custom_call.1} parent=1 // pred_check
      _
    $region43: #{tpu_custom_call.1} parent=1 // pred_check_branch
      %80 = sbr.rel (0) target = $region45
    $region44: #{tpu_custom_call.1} parent=1 // pred_region
      %82 = dma.done [#allocation3], 16
    $region45: #{tpu_custom_call.1} parent=1 // pred_fallthru
      _
    // Predicated region
    $region46: #{tpu_custom_call.1} parent=1 // pred_check
      _
    $region47: #{tpu_custom_call.1} parent=1 // pred_check_branch
      %84 = sbr.rel (0) target = $region49
    $region48: #{tpu_custom_call.1} parent=1 // pred_region
      %86 = dma.done [#allocation6], 16
    $region49: #{tpu_custom_call.1} parent=1 // pred_fallthru
      _
    // Predicated region
    $region50: #{tpu_custom_call.1} parent=1 // pred_check
      _
    $region51: #{tpu_custom_call.1} parent=1 // pred_check_branch
      %88 = sbr.rel (0) target = $region53
    $region52: #{tpu_custom_call.1} parent=1 // pred_region
      %90 = dma.done [#allocation6], 512
    $region53: #{tpu_custom_call.1} parent=1 // pred_fallthru
      _
    // Predicated region
    $region54: #{tpu_custom_call.1} parent=1 // pred_check
      _
    $region55: #{tpu_custom_call.1} parent=1 // pred_check_branch
      %92 = sbr.rel (0) target = $region57
    $region56: #{tpu_custom_call.1} parent=1 // pred_region
      %94 = dma.done [#allocation9], 256
    $region57: #{tpu_custom_call.1} parent=1 // pred_fallthru
      _
    %v95 = vld [vmem:[#allocation7] sm:$0xff]
    %v96 = vld [vmem:[#allocation7 + $0x8] sm:$0xff]
    %v97 = vld [vmem:[#allocation7 + $0x10] sm:$0xff]
    %v98 = vld [vmem:[#allocation7 + $0x18] sm:$0xff]
    %v99 = vld [vmem:[%s9] sm:$0x1]
    %v100 = vld [vmem:[#allocation2] sm:$0x1]
    %v101 = vunpack.c.l.bf16 %v100
    %v102 = vld [vmem:[#allocation8] sm:$0xff]
    %v103 = vld [vmem:[#allocation8 + $0x8] sm:$0xff]
    %vm104 = vcmask 130048
    %v106 = vsel %vm104, %v101, 0
    %108 = vmatpush.msra.mxu0 0.0
    %109 = vmatpush.msra.mxu0 0.0
    %110 = vmatpush.msra.mxu0 0.0
    %111 = vmatpush.msra.mxu0 0.0
    %112 = vmatpush.msra.mxu0 0.0
    %113 = vmatpush.msra.mxu0 0.0
    %114 = vmatpush.msra.mxu0 0.0
    %115 = vmatpush.msra.mxu0 0.0
    %116 = vmatpush.msra.mxu0 0.0
    %117 = vmatpush.msra.mxu0 0.0
    %118 = vmatpush.msra.mxu0 0.0
    %119 = vmatpush.msra.mxu0 0.0
    %120 = vmatpush.msra.mxu0 0.0
    %121 = vmatpush.msra.mxu0 0.0
    %122 = vmatpush.msra.mxu0 %v103
    %123 = vmatpush.msra.mxu0 %v102
    %124 = vmatmul.f32.gmra.mxu0 %v106
    %v125 = vpop.f32.mrf.mxu0
    %v126 = vadd.f32 0.0, %v125
    %127 = vdwg.mxu0
    %v128 = vld [vmem:[#allocation5] sm:$0x1]
    %v129 = vunpack.c.l.bf16 %v128
    %v130 = vld [vmem:[%s2] sm:$0x1]
    %v131 = vunpack.c.l.bf16 %v130
    %v132 = vld [vmem:[%s3] sm:$0x1]
    %v133 = vunpack.c.l.bf16 %v132
    %v134 = vld [vmem:[%s4] sm:$0x1]
    %v135 = vunpack.c.l.bf16 %v134
    %v136 = vld [vmem:[%s5] sm:$0x1]
    %v137 = vunpack.c.l.bf16 %v136
    %v138 = vld [vmem:[%s6] sm:$0x1]
    %v139 = vunpack.c.l.bf16 %v138
    %vm140 = vcmask 261120
    %v142 = vsel %vm140, %v129, 0
    %144 = vmatpush.msra.mxu0 0.0
    %145 = vmatpush.msra.mxu0 0.0
    %146 = vmatpush.msra.mxu0 0.0
    %147 = vmatpush.msra.mxu0 0.0
    %148 = vmatpush.msra.mxu0 0.0
    %149 = vmatpush.msra.mxu0 0.0
    %150 = vmatpush.msra.mxu0 0.0
    %151 = vmatpush.msra.mxu0 0.0
    %152 = vmatpush.msra.mxu0 0.0
    %153 = vmatpush.msra.mxu0 0.0
    %154 = vmatpush.msra.mxu0 0.0
    %155 = vmatpush.msra.mxu0 0.0
    %156 = vmatpush.msra.mxu0 %v98
    %157 = vmatpush.msra.mxu0 %v97
    %158 = vmatpush.msra.mxu0 %v96
    %159 = vmatpush.msra.mxu0 %v95
    %160 = vmatmul.f32.gmra.mxu0 %v142
    %v161 = vpop.f32.mrf.mxu0
    %v162 = vadd.f32 %v126, %v161
    %163 = vdwg.mxu0
    %v164 = vpack.c.bf16 %v162, %v162
    %v165 = vunpack.c.l.bf16 %v164
    %v166 = vtanh.pop %v165
    %v167 = vpack.c.bf16 %v166, %v166
    %v168 = vunpack.c.l.bf16 %v167
    %v170 = vperm.slane %v99, 0
    %v172 = vmul.f32 %v168, %v170
    %vm173 = vcmask 254976
    %v174 = vsel %vm173, %v172, 0.0
    %175 = vadd.xlane.f32.xlu0 %v174
    %v176 = vpop.xlane.xlu0 %175
    %v178 = vsel %vm140, %v131, 0
    %180 = vmatpush.msra.mxu0 0.0
    %181 = vmatpush.msra.mxu0 0.0
    %182 = vmatpush.msra.mxu0 0.0
    %183 = vmatpush.msra.mxu0 0.0
    %184 = vmatpush.msra.mxu0 0.0
    %185 = vmatpush.msra.mxu0 0.0
    %186 = vmatpush.msra.mxu0 0.0
    %187 = vmatpush.msra.mxu0 0.0
    %188 = vmatpush.msra.mxu0 0.0
    %189 = vmatpush.msra.mxu0 0.0
    %190 = vmatpush.msra.mxu0 0.0
    %191 = vmatpush.msra.mxu0 0.0
    %192 = vmatpush.msra.mxu0 %v98
    %193 = vmatpush.msra.mxu0 %v97
    %194 = vmatpush.msra.mxu0 %v96
    %195 = vmatpush.msra.mxu0 %v95
    %196 = vmatmul.f32.gmra.mxu0 %v178
    %v197 = vpop.f32.mrf.mxu0
    %v198 = vadd.f32 %v126, %v197
    %199 = vdwg.mxu0
    %v200 = vpack.c.bf16 %v198, %v198
    %v201 = vunpack.c.l.bf16 %v200
    %v202 = vtanh.pop %v201
    %v203 = vpack.c.bf16 %v202, %v202
    %v204 = vunpack.c.l.bf16 %v203
    %v205 = vmul.f32 %v204, %v170
    %v206 = vsel %vm173, %v205, 0.0
    %207 = vadd.xlane.f32.xlu0 %v206
    %v208 = vpop.xlane.xlu0 %207
    %v210 = vsel %vm140, %v133, 0
    %212 = vmatpush.msra.mxu0 0.0
    %213 = vmatpush.msra.mxu0 0.0
    %214 = vmatpush.msra.mxu0 0.0
    %215 = vmatpush.msra.mxu0 0.0
    %216 = vmatpush.msra.mxu0 0.0
    %217 = vmatpush.msra.mxu0 0.0
    %218 = vmatpush.msra.mxu0 0.0
    %219 = vmatpush.msra.mxu0 0.0
    %220 = vmatpush.msra.mxu0 0.0
    %221 = vmatpush.msra.mxu0 0.0
    %222 = vmatpush.msra.mxu0 0.0
    %223 = vmatpush.msra.mxu0 0.0
    %224 = vmatpush.msra.mxu0 %v98
    %225 = vmatpush.msra.mxu0 %v97
    %226 = vmatpush.msra.mxu0 %v96
    %227 = vmatpush.msra.mxu0 %v95
    %228 = vmatmul.f32.gmra.mxu0 %v210
    %v229 = vpop.f32.mrf.mxu0
    %v230 = vadd.f32 %v126, %v229
    %231 = vdwg.mxu0
    %v232 = vpack.c.bf16 %v230, %v230
    %v233 = vunpack.c.l.bf16 %v232
    %v234 = vtanh.pop %v233
    %v235 = vpack.c.bf16 %v234, %v234
    %v236 = vunpack.c.l.bf16 %v235
    %v237 = vmul.f32 %v236, %v170
    %v238 = vsel %vm173, %v237, 0.0
    %239 = vadd.xlane.f32.xlu0 %v238
    %v240 = vpop.xlane.xlu0 %239
    %v242 = vsel %vm140, %v135, 0
    %244 = vmatpush.msra.mxu0 0.0
    %245 = vmatpush.msra.mxu0 0.0
    %246 = vmatpush.msra.mxu0 0.0
    %247 = vmatpush.msra.mxu0 0.0
    %248 = vmatpush.msra.mxu0 0.0
    %249 = vmatpush.msra.mxu0 0.0
    %250 = vmatpush.msra.mxu0 0.0
    %251 = vmatpush.msra.mxu0 0.0
    %252 = vmatpush.msra.mxu0 0.0
    %253 = vmatpush.msra.mxu0 0.0
    %254 = vmatpush.msra.mxu0 0.0
    %255 = vmatpush.msra.mxu0 0.0
    %256 = vmatpush.msra.mxu0 %v98
    %257 = vmatpush.msra.mxu0 %v97
    %258 = vmatpush.msra.mxu0 %v96
    %259 = vmatpush.msra.mxu0 %v95
    %260 = vmatmul.f32.gmra.mxu0 %v242
    %v261 = vpop.f32.mrf.mxu0
    %v262 = vadd.f32 %v126, %v261
    %263 = vdwg.mxu0
    %v264 = vpack.c.bf16 %v262, %v262
    %v265 = vunpack.c.l.bf16 %v264
    %v266 = vtanh.pop %v265
    %v267 = vpack.c.bf16 %v266, %v266
    %v268 = vunpack.c.l.bf16 %v267
    %v269 = vmul.f32 %v268, %v170
    %v270 = vsel %vm173, %v269, 0.0
    %271 = vadd.xlane.f32.xlu0 %v270
    %v272 = vpop.xlane.xlu0 %271
    %v274 = vsel %vm140, %v137, 0
    %276 = vmatpush.msra.mxu0 0.0
    %277 = vmatpush.msra.mxu0 0.0
    %278 = vmatpush.msra.mxu0 0.0
    %279 = vmatpush.msra.mxu0 0.0
    %280 = vmatpush.msra.mxu0 0.0
    %281 = vmatpush.msra.mxu0 0.0
    %282 = vmatpush.msra.mxu0 0.0
    %283 = vmatpush.msra.mxu0 0.0
    %284 = vmatpush.msra.mxu0 0.0
    %285 = vmatpush.msra.mxu0 0.0
    %286 = vmatpush.msra.mxu0 0.0
    %287 = vmatpush.msra.mxu0 0.0
    %288 = vmatpush.msra.mxu0 %v98
    %289 = vmatpush.msra.mxu0 %v97
    %290 = vmatpush.msra.mxu0 %v96
    %291 = vmatpush.msra.mxu0 %v95
    %292 = vmatmul.f32.gmra.mxu0 %v274
    %v293 = vpop.f32.mrf.mxu0
    %v294 = vadd.f32 %v126, %v293
    %295 = vdwg.mxu0
    %v296 = vpack.c.bf16 %v294, %v294
    %v297 = vunpack.c.l.bf16 %v296
    %v298 = vtanh.pop %v297
    %v299 = vpack.c.bf16 %v298, %v298
    %v300 = vunpack.c.l.bf16 %v299
    %v301 = vmul.f32 %v300, %v170
    %v302 = vsel %vm173, %v301, 0.0
    %303 = vadd.xlane.f32.xlu0 %v302
    %v304 = vpop.xlane.xlu0 %303
    %v306 = vsel %vm140, %v139, 0
    %308 = vmatpush.msra.mxu0 0.0
    %309 = vmatpush.msra.mxu0 0.0
    %310 = vmatpush.msra.mxu0 0.0
    %311 = vmatpush.msra.mxu0 0.0
    %312 = vmatpush.msra.mxu0 0.0
    %313 = vmatpush.msra.mxu0 0.0
    %314 = vmatpush.msra.mxu0 0.0
    %315 = vmatpush.msra.mxu0 0.0
    %316 = vmatpush.msra.mxu0 0.0
    %317 = vmatpush.msra.mxu0 0.0
    %318 = vmatpush.msra.mxu0 0.0
    %319 = vmatpush.msra.mxu0 0.0
    %320 = vmatpush.msra.mxu0 %v98
    %321 = vmatpush.msra.mxu0 %v97
    %322 = vmatpush.msra.mxu0 %v96
    %323 = vmatpush.msra.mxu0 %v95
    %324 = vmatmul.f32.gmra.mxu0 %v306
    %v325 = vpop.f32.mrf.mxu0
    %v326 = vadd.f32 %v126, %v325
    %327 = vdwg.mxu0
    %v328 = vpack.c.bf16 %v326, %v326
    %v329 = vunpack.c.l.bf16 %v328
    %v330 = vtanh.pop %v329
    %v331 = vpack.c.bf16 %v330, %v330
    %v332 = vunpack.c.l.bf16 %v331
    %v333 = vmul.f32 %v332, %v170
    %v334 = vsel %vm173, %v333, 0.0
    %335 = vadd.xlane.f32.xlu0 %v334
    %v336 = vpop.xlane.xlu0 %335
    %v337 = vmax.f32 %v176, %v208
    %v338 = vmax.f32 %v337, %v240
    %v339 = vmax.f32 %v338, %v272
    %v340 = vmax.f32 %v339, %v304
    %v341 = vmax.f32 %v340, %v336
    %v342 = vsub.f32 %v176, %v341
    %v343 = vmul.f32 %v342, 1.442695
    %v344 = vpow.pop %v343
    %v345 = vsub.f32 %v208, %v341
    %v346 = vmul.f32 %v345, 1.442695
    %v347 = vpow.pop %v346
    %v348 = vsub.f32 %v240, %v341
    %v349 = vmul.f32 %v348, 1.442695
    %v350 = vpow.pop %v349
    %v351 = vsub.f32 %v272, %v341
    %v352 = vmul.f32 %v351, 1.442695
    %v353 = vpow.pop %v352
    %v354 = vsub.f32 %v304, %v341
    %v355 = vmul.f32 %v354, 1.442695
    %v356 = vpow.pop %v355
    %v357 = vsub.f32 %v336, %v341
    %v358 = vmul.f32 %v357, 1.442695
    %v359 = vpow.pop %v358
    %v360 = vadd.f32 %v344, %v347
    %v361 = vadd.f32 %v360, %v350
    %v362 = vadd.f32 %v361, %v353
    %v363 = vadd.f32 %v362, %v356
    %v364 = vadd.f32 %v363, %v359
    %v365 = vrcp.pop %v364
    %v366 = vmul.f32 %v344, %v365
    %v367 = vmul.f32 %v366, %v129
    %v368 = vmul.f32 %v347, %v365
    %v369 = vmul.f32 %v368, %v131
    %v370 = vadd.f32 %v367, %v369
    %v371 = vmul.f32 %v350, %v365
    %v372 = vmul.f32 %v371, %v133
    %v373 = vadd.f32 %v370, %v372
    %v374 = vmul.f32 %v353, %v365
    %v375 = vmul.f32 %v374, %v135
    %v376 = vadd.f32 %v373, %v375
    %v377 = vmul.f32 %v356, %v365
    %v378 = vmul.f32 %v377, %v137
    %v379 = vadd.f32 %v376, %v378
    %v380 = vmul.f32 %v359, %v365
    %v381 = vmul.f32 %v380, %v139
    %v382 = vadd.f32 %v379, %v381
    %383 = vst.msk [vmem:[#allocation10] sm:$0x3] %vm173, %v382
    // Predicated region
    $region58: #{tpu_custom_call.1} parent=1 // pred_check
      _
    $region59: #{tpu_custom_call.1} parent=1 // pred_check_branch
      %385 = sbr.rel (0) target = $region61
    $region60: #{tpu_custom_call.1} parent=1 // pred_region
      %387 = vsyncadd [#allocation4], 0
      %s389 = sshll.u32 [#allocation10], 4
      %s390 = int_to_ptr.vmem [resolvable:$true] %s389
      %s391 = sshll.u32 %s10, 4
      %s392 = int_to_ptr.hbm [resolvable:$true] %s391
      %394 = dma.vmem_to_hbm [thread:$0]  %s390, 32, %s392, [#allocation4]
    $region61: #{tpu_custom_call.1} parent=1 // pred_fallthru
      _
    // Predicated region
    $region62: #{tpu_custom_call.1} parent=1 // pred_check
      _
    $region63: #{tpu_custom_call.1} parent=1 // pred_check_branch
      %396 = sbr.rel (0) target = $region65
    $region64: #{tpu_custom_call.1} parent=1 // pred_region
      %398 = dma.done [#allocation4], 32
    $region65: #{tpu_custom_call.1} parent=1 // pred_fallthru
      _
    %399 = vsyncpa [#allocation3], 1
    %400 = vsyncpa [#allocation6], 1
    %401 = vsyncpa [#allocation9], 1
    %402 = vsyncpa [#allocation4], 1

</llo_original>
